<compile_context>
chip_gen: v7x
topology: tpu7x:2x2x1
jax: 0.10.0
libtpu: 0.0.40
codegen_flags: <defaults>
</compile_context>

<pallas_src>
import jax
import jax.numpy as jnp
from jax import lax
from jax.experimental import pallas as pl
from jax.experimental.pallas import tpu as pltpu
import numpy as np

# ---- module hyperparameters (typical ASPP branch: 3x3, dilation=2, padding=2) ----
N, H, W = 2, 16, 16
CIN, COUT = 8, 16
KH = KW = 3
DILATION = 2
PADDING = 2
BN_EPS = 1e-5

KK = KH * KW * CIN        # im2col contraction dim = 72
HW = H * W                # flattened spatial      = 256
LANES = N * HW            # merged (batch, spatial) lane axis = 512

assert HW & (HW - 1) == 0 and W & (W - 1) == 0, "bit-mask coordinate math assumes powers of two"
assert HW % 128 == 0, "per-batch lane slices must stay 128-aligned for unmasked stores"


def aspp_kernel(x_ref, w_ref, o_ref, p_ref):
    """Fused in-kernel im2col + dilated conv matmul + BatchNorm (batch stats) + ReLU.

    x_ref: (CIN, N*HW)   input, channels on sublanes, (batch, spatial) merged on lanes
    w_ref: (COUT, KK)    flattened conv weight, K ordered (kh, kw, cin)
    o_ref: (N, COUT, HW) output, lane-dense
    p_ref: (KK, N*HW)    VMEM scratch: im2col patch matrix
    """
    x = x_ref[...]                                      # (CIN, LANES)
    wt = w_ref[...]                                     # (COUT, KK)

    # Per-lane output-pixel coordinates (hoisted out of the tap loop; powers of two -> AND).
    lane = lax.broadcasted_iota(jnp.int32, (1, LANES), 1)
    pix = lane & (HW - 1)                               # index within one image (= h*W + w)
    wcol = pix & (W - 1)                                # column within a row

    # Build the im2col patch matrix in VMEM: one pltpu.roll (XLU) + edge mask per dilated tap.
    for t, (kh, kw) in enumerate([(a, b) for a in range(KH) for b in range(KW)]):
        dh = kh * DILATION - PADDING
        dw = kw * DILATION - PADDING
        delta = dh * W + dw                             # lane shift for this tap
        tap = x if delta == 0 else pltpu.roll(x, shift=(-delta) % LANES, axis=1)
        conds = []
        if dh > 0:
            conds.append(pix < (H - dh) * W)            # h + dh < H
        if dh < 0:
            conds.append(pix >= (-dh) * W)              # h + dh >= 0
        if dw > 0:
            conds.append(wcol < (W - dw))               # w + dw < W
        if dw < 0:
            conds.append(wcol >= (-dw))                 # w + dw >= 0
        if conds:
            valid = conds[0]
            for c in conds[1:]:
                valid = valid & c
            # Zero-padding halo; also zeroes any lane whose roll wrapped across a batch
            # boundary (those are always out-of-image positions).
            tap = jnp.where(valid, tap, 0.0)
        p_ref[t * CIN:(t + 1) * CIN, :] = tap           # aligned 8-sublane store

    # One MXU matmul for all 9 taps and both batch elements: (16,72) x (72,512) -> (16,512).
    acc = jnp.dot(wt, p_ref[...], preferred_element_type=jnp.float32)

    # BatchNorm2d in training mode: batch stats, biased variance, gamma=1, beta=0 (one-pass).
    inv_m = 1.0 / float(LANES)
    mean = jnp.sum(acc, axis=1, keepdims=True) * inv_m                     # (COUT, 1)
    var = jnp.sum(acc * acc, axis=1, keepdims=True) * inv_m - mean * mean  # one-pass variance
    scale = lax.rsqrt(var + BN_EPS)                                        # EUP

    y = jnp.maximum((acc - mean) * scale, 0.0)          # conv -> BN -> ReLU, (COUT, LANES)
    for n in range(N):                                  # static, 128-aligned lane slices
        o_ref[n] = y[:, n * HW:(n + 1) * HW]


@jax.jit
def aspp_forward(x_nchw, weight_oihw):
    """x_nchw: (N, CIN, H, W) f32; weight_oihw: (COUT, CIN, KH, KW) f32 -> (N, COUT, H, W)."""
    # Tiny (16 KiB) relayout: channels on sublanes, (batch, spatial) merged on lanes.
    x_flat = jnp.transpose(x_nchw, (1, 0, 2, 3)).reshape(CIN, LANES)
    # (COUT, CIN, KH, KW) -> (COUT, KH, KW, CIN) -> (COUT, 72); matches the kernel's K ordering.
    w_flat = jnp.transpose(weight_oihw, (0, 2, 3, 1)).reshape(COUT, KK)

    out = pl.pallas_call(
        aspp_kernel,
        out_shape=jax.ShapeDtypeStruct((N, COUT, HW), jnp.float32),
        in_specs=[
            pl.BlockSpec(memory_space=pltpu.MemorySpace.VMEM),
            pl.BlockSpec(memory_space=pltpu.MemorySpace.VMEM),
        ],
        out_specs=pl.BlockSpec(memory_space=pltpu.MemorySpace.VMEM),
        scratch_shapes=[pltpu.VMEM((KK, LANES), jnp.float32)],
    )(x_flat, w_flat)

    # Pure reshape (no transpose) back to NCHW.
    return out.reshape(N, COUT, H, W)


@jax.jit
def reference_forward(x_nchw, weight_oihw):
    """Pure-JAX reference (lax dilated conv + BN(batch stats) + ReLU), NCHW."""
    conv = lax.conv_general_dilated(
        x_nchw, weight_oihw,
        window_strides=(1, 1),
        padding=((PADDING, PADDING), (PADDING, PADDING)),
        rhs_dilation=(DILATION, DILATION),
        dimension_numbers=("NCHW", "OIHW", "NCHW"),
    )
    mean = jnp.mean(conv, axis=(0, 2, 3), keepdims=True)
    var = jnp.mean((conv - mean) ** 2, axis=(0, 2, 3), keepdims=True)
    y = (conv - mean) * lax.rsqrt(var + BN_EPS)
    return jnp.maximum(y, 0.0)


if __name__ == "__main__":
    key = jax.random.PRNGKey(0)
    kx, kw = jax.random.split(key)

    x = jax.random.normal(kx, (N, CIN, H, W), dtype=jnp.float32)

    # kaiming_normal_ (fan_in mode, relu gain): std = sqrt(2 / (CIN*KH*KW)); deterministic init.
    fan_in = CIN * KH * KW
    std = float(np.sqrt(2.0 / fan_in))
    weight = std * jax.random.normal(kw, (COUT, CIN, KH, KW), dtype=jnp.float32)
    # BatchNorm: weight filled with 1, bias zeroed -> folded into the kernel (gamma=1, beta=0).
    # TODO(synk): BatchNorm running-stat updates (training-time side effect) are not modeled;
    #             only the forward output (batch-statistics normalization) is produced.

    out = jax.block_until_ready(aspp_forward(x, weight))
    ref = jax.block_until_ready(reference_forward(x, weight))
    np.testing.assert_allclose(np.asarray(out), np.asarray(ref), atol=1e-4, rtol=1e-4)

    print("KERNEL_OK")
</pallas_src>

<mosaic_0001>
module attributes {stable_mosaic.version = 11 : i64} {
  func.func @aspp_kernel(%arg0: memref<8x512xf32, #tpu.memory_space<vmem>>, %arg1: memref<16x72xf32, #tpu.memory_space<vmem>>, %arg2: memref<2x16x256xf32, #tpu.memory_space<vmem>>, %arg3: memref<72x512xf32, #tpu.memory_space<vmem>>) attributes {dimension_semantics = [], scalar_prefetch = 0 : i64, scratch_operands = 1 : i64, tpu.core_type = #tpu.core_type<tc>} {
    %c0 = arith.constant 0 : index
    %c0_0 = arith.constant 0 : index
    %0 = vector.load %arg0[%c0, %c0_0] : memref<8x512xf32, #tpu.memory_space<vmem>>, vector<8x512xf32>
    %c0_1 = arith.constant 0 : index
    %c0_2 = arith.constant 0 : index
    %1 = vector.load %arg1[%c0_1, %c0_2] : memref<16x72xf32, #tpu.memory_space<vmem>>, vector<16x72xf32>
    %2 = tpu.iota {dimensions = array<i32: 1>} : vector<1x512xi32>
    %c255_i32 = arith.constant 255 : i32
    %3 = vector.broadcast %c255_i32 : i32 to vector<1x512xi32>
    %4 = arith.andi %2, %3 : vector<1x512xi32>
    %c15_i32 = arith.constant 15 : i32
    %5 = vector.broadcast %c15_i32 : i32 to vector<1x512xi32>
    %6 = arith.andi %4, %5 : vector<1x512xi32>
    %c34_i32 = arith.constant 34 : i32
    %7 = tpu.dynamic_rotate %0 by %c34_i32 dim 1 : vector<8x512xf32>, i32 -> vector<8x512xf32>
    %c32_i32 = arith.constant 32 : i32
    %8 = vector.broadcast %c32_i32 : i32 to vector<1x512xi32>
    %9 = arith.cmpi sge, %4, %8 : vector<1x512xi32>
    %c2_i32 = arith.constant 2 : i32
    %10 = vector.broadcast %c2_i32 : i32 to vector<1x512xi32>
    %11 = arith.cmpi sge, %6, %10 : vector<1x512xi32>
    %12 = arith.andi %9, %11 : vector<1x512xi1>
    %cst = arith.constant 0.000000e+00 : f32
    %13 = vector.shape_cast %12 : vector<1x512xi1> to vector<1x512xi1>
    %14 = vector.broadcast %13 : vector<1x512xi1> to vector<8x512xi1>
    %15 = vector.broadcast %cst : f32 to vector<8x512xf32>
    %16 = arith.select %14, %7, %15 : vector<8x512xi1>, vector<8x512xf32>
    %c0_3 = arith.constant 0 : index
    %c0_4 = arith.constant 0 : index
    %17 = vector.load %arg3[%c0_3, %c0_4] : memref<72x512xf32, #tpu.memory_space<vmem>>, vector<8x512xf32>
    tpu.vector_store %arg3[%c0_3, %c0_4], %16 {strides = array<i32>} : memref<72x512xf32, #tpu.memory_space<vmem>>, vector<8x512xf32>,
    %c32_i32_5 = arith.constant 32 : i32
    %18 = tpu.dynamic_rotate %0 by %c32_i32_5 dim 1 : vector<8x512xf32>, i32 -> vector<8x512xf32>
    %c32_i32_6 = arith.constant 32 : i32
    %19 = vector.broadcast %c32_i32_6 : i32 to vector<1x512xi32>
    %20 = arith.cmpi sge, %4, %19 : vector<1x512xi32>
    %cst_7 = arith.constant 0.000000e+00 : f32
    %21 = vector.shape_cast %20 : vector<1x512xi1> to vector<1x512xi1>
    %22 = vector.broadcast %21 : vector<1x512xi1> to vector<8x512xi1>
    %23 = vector.broadcast %cst_7 : f32 to vector<8x512xf32>
    %24 = arith.select %22, %18, %23 : vector<8x512xi1>, vector<8x512xf32>
    %c8 = arith.constant 8 : index
    %c0_8 = arith.constant 0 : index
    %25 = vector.load %arg3[%c8, %c0_8] : memref<72x512xf32, #tpu.memory_space<vmem>>, vector<8x512xf32>
    tpu.vector_store %arg3[%c8, %c0_8], %24 {strides = array<i32>} : memref<72x512xf32, #tpu.memory_space<vmem>>, vector<8x512xf32>,
    %c30_i32 = arith.constant 30 : i32
    %26 = tpu.dynamic_rotate %0 by %c30_i32 dim 1 : vector<8x512xf32>, i32 -> vector<8x512xf32>
    %c32_i32_9 = arith.constant 32 : i32
    %27 = vector.broadcast %c32_i32_9 : i32 to vector<1x512xi32>
    %28 = arith.cmpi sge, %4, %27 : vector<1x512xi32>
    %c14_i32 = arith.constant 14 : i32
    %29 = vector.broadcast %c14_i32 : i32 to vector<1x512xi32>
    %30 = arith.cmpi slt, %6, %29 : vector<1x512xi32>
    %31 = arith.andi %28, %30 : vector<1x512xi1>
    %cst_10 = arith.constant 0.000000e+00 : f32
    %32 = vector.shape_cast %31 : vector<1x512xi1> to vector<1x512xi1>
    %33 = vector.broadcast %32 : vector<1x512xi1> to vector<8x512xi1>
    %34 = vector.broadcast %cst_10 : f32 to vector<8x512xf32>
    %35 = arith.select %33, %26, %34 : vector<8x512xi1>, vector<8x512xf32>
    %c16 = arith.constant 16 : index
    %c0_11 = arith.constant 0 : index
    %36 = vector.load %arg3[%c16, %c0_11] : memref<72x512xf32, #tpu.memory_space<vmem>>, vector<8x512xf32>
    tpu.vector_store %arg3[%c16, %c0_11], %35 {strides = array<i32>} : memref<72x512xf32, #tpu.memory_space<vmem>>, vector<8x512xf32>,
    %c2_i32_12 = arith.constant 2 : i32
    %37 = tpu.dynamic_rotate %0 by %c2_i32_12 dim 1 : vector<8x512xf32>, i32 -> vector<8x512xf32>
    %c2_i32_13 = arith.constant 2 : i32
    %38 = vector.broadcast %c2_i32_13 : i32 to vector<1x512xi32>
    %39 = arith.cmpi sge, %6, %38 : vector<1x512xi32>
    %cst_14 = arith.constant 0.000000e+00 : f32
    %40 = vector.shape_cast %39 : vector<1x512xi1> to vector<1x512xi1>
    %41 = vector.broadcast %40 : vector<1x512xi1> to vector<8x512xi1>
    %42 = vector.broadcast %cst_14 : f32 to vector<8x512xf32>
    %43 = arith.select %41, %37, %42 : vector<8x512xi1>, vector<8x512xf32>
    %c24 = arith.constant 24 : index
    %c0_15 = arith.constant 0 : index
    %44 = vector.load %arg3[%c24, %c0_15] : memref<72x512xf32, #tpu.memory_space<vmem>>, vector<8x512xf32>
    tpu.vector_store %arg3[%c24, %c0_15], %43 {strides = array<i32>} : memref<72x512xf32, #tpu.memory_space<vmem>>, vector<8x512xf32>,
    %c32 = arith.constant 32 : index
    %c0_16 = arith.constant 0 : index
    %45 = vector.load %arg3[%c32, %c0_16] : memref<72x512xf32, #tpu.memory_space<vmem>>, vector<8x512xf32>
    tpu.vector_store %arg3[%c32, %c0_16], %0 {strides = array<i32>} : memref<72x512xf32, #tpu.memory_space<vmem>>, vector<8x512xf32>,
    %c510_i32 = arith.constant 510 : i32
    %46 = tpu.dynamic_rotate %0 by %c510_i32 dim 1 : vector<8x512xf32>, i32 -> vector<8x512xf32>
    %c14_i32_17 = arith.constant 14 : i32
    %47 = vector.broadcast %c14_i32_17 : i32 to vector<1x512xi32>
    %48 = arith.cmpi slt, %6, %47 : vector<1x512xi32>
    %cst_18 = arith.constant 0.000000e+00 : f32
    %49 = vector.shape_cast %48 : vector<1x512xi1> to vector<1x512xi1>
    %50 = vector.broadcast %49 : vector<1x512xi1> to vector<8x512xi1>
    %51 = vector.broadcast %cst_18 : f32 to vector<8x512xf32>
    %52 = arith.select %50, %46, %51 : vector<8x512xi1>, vector<8x512xf32>
    %c40 = arith.constant 40 : index
    %c0_19 = arith.constant 0 : index
    %53 = vector.load %arg3[%c40, %c0_19] : memref<72x512xf32, #tpu.memory_space<vmem>>, vector<8x512xf32>
    tpu.vector_store %arg3[%c40, %c0_19], %52 {strides = array<i32>} : memref<72x512xf32, #tpu.memory_space<vmem>>, vector<8x512xf32>,
    %c482_i32 = arith.constant 482 : i32
    %54 = tpu.dynamic_rotate %0 by %c482_i32 dim 1 : vector<8x512xf32>, i32 -> vector<8x512xf32>
    %c224_i32 = arith.constant 224 : i32
    %55 = vector.broadcast %c224_i32 : i32 to vector<1x512xi32>
    %56 = arith.cmpi slt, %4, %55 : vector<1x512xi32>
    %c2_i32_20 = arith.constant 2 : i32
    %57 = vector.broadcast %c2_i32_20 : i32 to vector<1x512xi32>
    %58 = arith.cmpi sge, %6, %57 : vector<1x512xi32>
    %59 = arith.andi %56, %58 : vector<1x512xi1>
    %cst_21 = arith.constant 0.000000e+00 : f32
    %60 = vector.shape_cast %59 : vector<1x512xi1> to vector<1x512xi1>
    %61 = vector.broadcast %60 : vector<1x512xi1> to vector<8x512xi1>
    %62 = vector.broadcast %cst_21 : f32 to vector<8x512xf32>
    %63 = arith.select %61, %54, %62 : vector<8x512xi1>, vector<8x512xf32>
    %c48 = arith.constant 48 : index
    %c0_22 = arith.constant 0 : index
    %64 = vector.load %arg3[%c48, %c0_22] : memref<72x512xf32, #tpu.memory_space<vmem>>, vector<8x512xf32>
    tpu.vector_store %arg3[%c48, %c0_22], %63 {strides = array<i32>} : memref<72x512xf32, #tpu.memory_space<vmem>>, vector<8x512xf32>,
    %c480_i32 = arith.constant 480 : i32
    %65 = tpu.dynamic_rotate %0 by %c480_i32 dim 1 : vector<8x512xf32>, i32 -> vector<8x512xf32>
    %c224_i32_23 = arith.constant 224 : i32
    %66 = vector.broadcast %c224_i32_23 : i32 to vector<1x512xi32>
    %67 = arith.cmpi slt, %4, %66 : vector<1x512xi32>
    %cst_24 = arith.constant 0.000000e+00 : f32
    %68 = vector.shape_cast %67 : vector<1x512xi1> to vector<1x512xi1>
    %69 = vector.broadcast %68 : vector<1x512xi1> to vector<8x512xi1>
    %70 = vector.broadcast %cst_24 : f32 to vector<8x512xf32>
    %71 = arith.select %69, %65, %70 : vector<8x512xi1>, vector<8x512xf32>
    %c56 = arith.constant 56 : index
    %c0_25 = arith.constant 0 : index
    %72 = vector.load %arg3[%c56, %c0_25] : memref<72x512xf32, #tpu.memory_space<vmem>>, vector<8x512xf32>
    tpu.vector_store %arg3[%c56, %c0_25], %71 {strides = array<i32>} : memref<72x512xf32, #tpu.memory_space<vmem>>, vector<8x512xf32>,
    %c478_i32 = arith.constant 478 : i32
    %73 = tpu.dynamic_rotate %0 by %c478_i32 dim 1 : vector<8x512xf32>, i32 -> vector<8x512xf32>
    %c224_i32_26 = arith.constant 224 : i32
    %74 = vector.broadcast %c224_i32_26 : i32 to vector<1x512xi32>
    %75 = arith.cmpi slt, %4, %74 : vector<1x512xi32>
    %c14_i32_27 = arith.constant 14 : i32
    %76 = vector.broadcast %c14_i32_27 : i32 to vector<1x512xi32>
    %77 = arith.cmpi slt, %6, %76 : vector<1x512xi32>
    %78 = arith.andi %75, %77 : vector<1x512xi1>
    %cst_28 = arith.constant 0.000000e+00 : f32
    %79 = vector.shape_cast %78 : vector<1x512xi1> to vector<1x512xi1>
    %80 = vector.broadcast %79 : vector<1x512xi1> to vector<8x512xi1>
    %81 = vector.broadcast %cst_28 : f32 to vector<8x512xf32>
    %82 = arith.select %80, %73, %81 : vector<8x512xi1>, vector<8x512xf32>
    %c64 = arith.constant 64 : index
    %c0_29 = arith.constant 0 : index
    %83 = vector.load %arg3[%c64, %c0_29] : memref<72x512xf32, #tpu.memory_space<vmem>>, vector<8x512xf32>
    tpu.vector_store %arg3[%c64, %c0_29], %82 {strides = array<i32>} : memref<72x512xf32, #tpu.memory_space<vmem>>, vector<8x512xf32>,
    %c0_30 = arith.constant 0 : index
    %c0_31 = arith.constant 0 : index
    %84 = vector.load %arg3[%c0_30, %c0_31] : memref<72x512xf32, #tpu.memory_space<vmem>>, vector<72x512xf32>
    %cst_32 = arith.constant dense<0.000000e+00> : vector<16x512xf32>
    %85 = tpu.matmul %1, %84, %cst_32 {dimension_numbers = #tpu.dot_dimension_numbers<[1], [0], [0], [1], [0, 0, 1, 1], [], []>} : vector<16x72xf32>, vector<72x512xf32>, vector<16x512xf32> -> vector<16x512xf32>
    %cst_33 = arith.constant dense<0.000000e+00> : vector<16xf32>
    %86 = vector.multi_reduction <add>, %85, %cst_33 [1] : vector<16x512xf32> to vector<16xf32>
    %87 = vector.shape_cast %86 : vector<16xf32> to vector<16x1xf32>
    %cst_34 = arith.constant 0.001953125 : f32
    %88 = vector.broadcast %cst_34 : f32 to vector<16x1xf32>
    %89 = arith.mulf %87, %88 : vector<16x1xf32>
    %90 = arith.mulf %85, %85 : vector<16x512xf32>
    %cst_35 = arith.constant dense<0.000000e+00> : vector<16xf32>
    %91 = vector.multi_reduction <add>, %90, %cst_35 [1] : vector<16x512xf32> to vector<16xf32>
    %92 = vector.shape_cast %91 : vector<16xf32> to vector<16x1xf32>
    %cst_36 = arith.constant 0.001953125 : f32
    %93 = vector.broadcast %cst_36 : f32 to vector<16x1xf32>
    %94 = arith.mulf %92, %93 : vector<16x1xf32>
    %95 = arith.mulf %89, %89 : vector<16x1xf32>
    %96 = arith.subf %94, %95 : vector<16x1xf32>
    %cst_37 = arith.constant 9.99999974E-6 : f32
    %97 = vector.broadcast %cst_37 : f32 to vector<16x1xf32>
    %98 = arith.addf %96, %97 : vector<16x1xf32>
    %99 = math.rsqrt %98 : vector<16x1xf32>
    %100 = vector.broadcast %89 : vector<16x1xf32> to vector<16x512xf32>
    %101 = arith.subf %85, %100 : vector<16x512xf32>
    %102 = vector.broadcast %99 : vector<16x1xf32> to vector<16x512xf32>
    %103 = arith.mulf %101, %102 : vector<16x512xf32>
    %cst_38 = arith.constant 0.000000e+00 : f32
    %104 = vector.broadcast %cst_38 : f32 to vector<16x512xf32>
    %105 = arith.maximumf %103, %104 : vector<16x512xf32>
    %106 = vector.extract_strided_slice %105 {offsets = [0, 0], sizes = [16, 256], strides = [1, 1]} : vector<16x512xf32> to vector<16x256xf32>
    %c0_39 = arith.constant 0 : index
    %c0_40 = arith.constant 0 : index
    %c0_41 = arith.constant 0 : index
    %107 = vector.load %arg2[%c0_39, %c0_40, %c0_41] : memref<2x16x256xf32, #tpu.memory_space<vmem>>, vector<1x16x256xf32>
    %108 = vector.shape_cast %107 : vector<1x16x256xf32> to vector<16x256xf32>
    %109 = vector.shape_cast %106 : vector<16x256xf32> to vector<1x16x256xf32>
    tpu.vector_store %arg2[%c0_39, %c0_40, %c0_41], %109 {strides = array<i32>} : memref<2x16x256xf32, #tpu.memory_space<vmem>>, vector<1x16x256xf32>,
    %110 = vector.extract_strided_slice %105 {offsets = [0, 256], sizes = [16, 256], strides = [1, 1]} : vector<16x512xf32> to vector<16x256xf32>
    %c1 = arith.constant 1 : index
    %c0_42 = arith.constant 0 : index
    %c0_43 = arith.constant 0 : index
    %111 = vector.load %arg2[%c1, %c0_42, %c0_43] : memref<2x16x256xf32, #tpu.memory_space<vmem>>, vector<1x16x256xf32>
    %112 = vector.shape_cast %111 : vector<1x16x256xf32> to vector<16x256xf32>
    %113 = vector.shape_cast %110 : vector<16x256xf32> to vector<1x16x256xf32>
    tpu.vector_store %arg2[%c1, %c0_42, %c0_43], %113 {strides = array<i32>} : memref<2x16x256xf32, #tpu.memory_space<vmem>>, vector<1x16x256xf32>,
    return
  }
}

</mosaic_0001>

<llo_original>
// kernel: aspp_forward.1
$region0: #{aspp_forward.1}
  #allocation0 [shape = 'u32[]', space=smem, size = 0x4, offset = 0x4, fixed_abs, tag = 'smem constant byte address 0x4 - core index']
  #allocation1 [shape = 'u32[144,128]{1,0:T(1,128)}', space=vmem, size = 0x12000, scoped, tag = 'internal scratch']
  #allocation2 [shape = 'f32[72,512]{1,0:T(8,128)}', space=vmem, size = 0x24000, scoped, tag = 'scratch operand']
  %s0 = inlined_call_operand.vmem [shape: f32[8,512], index: 0, kind: input, shape index: {}]
  %s1 = inlined_call_operand.vmem [shape: f32[16,72], index: 1, kind: input, shape index: {}]
  %s2 = inlined_call_operand.vmem [shape: f32[2,16,256], index: 2, kind: output, shape index: {}]
  %s3 = sld [smem:[#allocation0]]
  $region18: #{aspp_forward.1} parent=0
    _
  %s5 = ssub.s32 1, %s3
  %s6 = scalar_select 0, %s5, %s3
  // Predicated region
  $region2: #{aspp_forward.1} parent=0 // pred_check
    _
  $region3: #{aspp_forward.1} parent=0 // pred_check_branch
    %8 = sbr.rel (0) target = $region5
  $region4: #{aspp_forward.1} parent=0 // pred_region
    _
  $region5: #{aspp_forward.1} parent=0 // pred_fallthru
    _
  // Predicated region
  $region6: #{aspp_forward.1} parent=0 // pred_check
    _
  $region7: #{aspp_forward.1} parent=0 // pred_check_branch
    %10 = sbr.rel (0) target = $region9
  $region8: #{aspp_forward.1} parent=0 // pred_region
    _
  $region9: #{aspp_forward.1} parent=0 // pred_fallthru
    _
  %v11 = vld [vmem:[%s0] sm:$0xff]
  %v12 = vld [vmem:[%s0 + $0x8] sm:$0xff]
  %v13 = vld [vmem:[%s0 + $0x10] sm:$0xff]
  %v14 = vld [vmem:[%s0 + $0x18] sm:$0xff]
  %v15 = vld [vmem:[%s1] sm:$0xff]
  %v16 = vld [vmem:[%s1 + $0x8] sm:$0xff]
  %v17 = vlaneseq
  %v18 = vand.u32 %v17, 127
  %v19 = vadd.s32 %v18, 128
  %v20 = vadd.s32 %v18, 256
  %v21 = vadd.s32 %v18, 384
  %v22 = vand.u32 %v18, 255
  %v23 = vand.u32 %v19, 255
  %v24 = vand.u32 %v20, 255
  %v25 = vand.u32 %v21, 255
  %v26 = vand.u32 %v22, 15
  %v27 = vand.u32 %v23, 15
  %v28 = vand.u32 %v24, 15
  %v29 = vand.u32 %v25, 15
  %30 = vrot.lane.b32.xlu0 %v11, 34
  %v31 = vpop.permute.xlu0 %30
  %32 = vrot.lane.b32.xlu0 %v12, 34
  %v33 = vpop.permute.xlu0 %32
  %34 = vrot.lane.b32.xlu0 %v13, 34
  %v35 = vpop.permute.xlu0 %34
  %36 = vrot.lane.b32.xlu0 %v14, 34
  %v37 = vpop.permute.xlu0 %36
  %vm38 = vcmp.lt.s32.totalorder %v18, 34
  %v39 = vsel %vm38, %v35, %v37
  %v40 = vsel %vm38, %v33, %v35
  %v41 = vsel %vm38, %v31, %v33
  %v42 = vsel %vm38, %v37, %v31
  %vm43 = vcmp.ge.s32.totalorder %v22, 32
  %vm44 = vcmp.ge.s32.totalorder %v23, 32
  %vm45 = vcmp.ge.s32.totalorder %v24, 32
  %vm46 = vcmp.ge.s32.totalorder %v25, 32
  %vm47 = vcmp.ge.s32.totalorder %v26, 2
  %vm48 = vcmp.ge.s32.totalorder %v27, 2
  %vm49 = vcmp.ge.s32.totalorder %v28, 2
  %vm50 = vcmp.ge.s32.totalorder %v29, 2
  %vm51 = vmand %vm43, %vm47
  %vm52 = vmand %vm44, %vm48
  %vm53 = vmand %vm45, %vm49
  %vm54 = vmand %vm46, %vm50
  %v55 = vsel %vm51, 1, 0
  %v56 = vsel %vm52, 1, 0
  %v57 = vsel %vm53, 1, 0
  %v58 = vsel %vm54, 1, 0
  %vm59 = vcmp.eq.s32.totalorder %v55, 1
  %vm60 = vcmp.eq.s32.totalorder %v56, 1
  %vm61 = vcmp.eq.s32.totalorder %v57, 1
  %vm62 = vcmp.eq.s32.totalorder %v58, 1
  %v63 = vsel %vm59, %v42, 0.0
  %v64 = vsel %vm60, %v41, 0.0
  %v65 = vsel %vm61, %v40, 0.0
  %v66 = vsel %vm62, %v39, 0.0
  %67 = vst [vmem:[#allocation2] sm:$0xff] %v63
  %68 = vst [vmem:[#allocation2 + $0x8] sm:$0xff] %v64
  %69 = vst [vmem:[#allocation2 + $0x10] sm:$0xff] %v65
  %70 = vst [vmem:[#allocation2 + $0x18] sm:$0xff] %v66
  %71 = vrot.lane.b32.xlu0 %v11, 32
  %v72 = vpop.permute.xlu0 %71
  %73 = vrot.lane.b32.xlu0 %v12, 32
  %v74 = vpop.permute.xlu0 %73
  %75 = vrot.lane.b32.xlu0 %v13, 32
  %v76 = vpop.permute.xlu0 %75
  %77 = vrot.lane.b32.xlu0 %v14, 32
  %v78 = vpop.permute.xlu0 %77
  %vm79 = vcmp.lt.s32.totalorder %v18, 32
  %v80 = vsel %vm79, %v76, %v78
  %v81 = vsel %vm79, %v74, %v76
  %v82 = vsel %vm79, %v72, %v74
  %v83 = vsel %vm79, %v78, %v72
  %v84 = vsel %vm43, 1, 0
  %v85 = vsel %vm44, 1, 0
  %v86 = vsel %vm45, 1, 0
  %v87 = vsel %vm46, 1, 0
  %vm88 = vcmp.eq.s32.totalorder %v84, 1
  %vm89 = vcmp.eq.s32.totalorder %v85, 1
  %vm90 = vcmp.eq.s32.totalorder %v86, 1
  %vm91 = vcmp.eq.s32.totalorder %v87, 1
  %v92 = vsel %vm88, %v83, 0.0
  %v93 = vsel %vm89, %v82, 0.0
  %v94 = vsel %vm90, %v81, 0.0
  %v95 = vsel %vm91, %v80, 0.0
  %96 = vst [vmem:[#allocation2 + $0x20] sm:$0xff] %v92
  %97 = vst [vmem:[#allocation2 + $0x28] sm:$0xff] %v93
  %98 = vst [vmem:[#allocation2 + $0x30] sm:$0xff] %v94
  %99 = vst [vmem:[#allocation2 + $0x38] sm:$0xff] %v95
  %100 = vrot.lane.b32.xlu0 %v11, 30
  %v101 = vpop.permute.xlu0 %100
  %102 = vrot.lane.b32.xlu0 %v12, 30
  %v103 = vpop.permute.xlu0 %102
  %104 = vrot.lane.b32.xlu0 %v13, 30
  %v105 = vpop.permute.xlu0 %104
  %106 = vrot.lane.b32.xlu0 %v14, 30
  %v107 = vpop.permute.xlu0 %106
  %vm108 = vcmp.lt.s32.totalorder %v18, 30
  %v109 = vsel %vm108, %v105, %v107
  %v110 = vsel %vm108, %v103, %v105
  %v111 = vsel %vm108, %v101, %v103
  %v112 = vsel %vm108, %v107, %v101
  %vm113 = vcmp.lt.s32.totalorder %v26, 14
  %vm114 = vcmp.lt.s32.totalorder %v27, 14
  %vm115 = vcmp.lt.s32.totalorder %v28, 14
  %vm116 = vcmp.lt.s32.totalorder %v29, 14
  %vm117 = vmand %vm43, %vm113
  %vm118 = vmand %vm44, %vm114
  %vm119 = vmand %vm45, %vm115
  %vm120 = vmand %vm46, %vm116
  %v121 = vsel %vm117, 1, 0
  %v122 = vsel %vm118, 1, 0
  %v123 = vsel %vm119, 1, 0
  %v124 = vsel %vm120, 1, 0
  %vm125 = vcmp.eq.s32.totalorder %v121, 1
  %vm126 = vcmp.eq.s32.totalorder %v122, 1
  %vm127 = vcmp.eq.s32.totalorder %v123, 1
  %vm128 = vcmp.eq.s32.totalorder %v124, 1
  %v129 = vsel %vm125, %v112, 0.0
  %v130 = vsel %vm126, %v111, 0.0
  %v131 = vsel %vm127, %v110, 0.0
  %v132 = vsel %vm128, %v109, 0.0
  %133 = vst [vmem:[#allocation2 + $0x40] sm:$0xff] %v129
  %134 = vst [vmem:[#allocation2 + $0x48] sm:$0xff] %v130
  %135 = vst [vmem:[#allocation2 + $0x50] sm:$0xff] %v131
  %136 = vst [vmem:[#allocation2 + $0x58] sm:$0xff] %v132
  %137 = vrot.lane.b32.xlu0 %v11, 2
  %v138 = vpop.permute.xlu0 %137
  %139 = vrot.lane.b32.xlu0 %v12, 2
  %v140 = vpop.permute.xlu0 %139
  %141 = vrot.lane.b32.xlu0 %v13, 2
  %v142 = vpop.permute.xlu0 %141
  %143 = vrot.lane.b32.xlu0 %v14, 2
  %v144 = vpop.permute.xlu0 %143
  %vm145 = vcmp.lt.s32.totalorder %v18, 2
  %v146 = vsel %vm145, %v142, %v144
  %v147 = vsel %vm145, %v140, %v142
  %v148 = vsel %vm145, %v138, %v140
  %v149 = vsel %vm145, %v144, %v138
  %v150 = vsel %vm47, 1, 0
  %v151 = vsel %vm48, 1, 0
  %v152 = vsel %vm49, 1, 0
  %v153 = vsel %vm50, 1, 0
  %vm154 = vcmp.eq.s32.totalorder %v150, 1
  %vm155 = vcmp.eq.s32.totalorder %v151, 1
  %vm156 = vcmp.eq.s32.totalorder %v152, 1
  %vm157 = vcmp.eq.s32.totalorder %v153, 1
  %v158 = vsel %vm154, %v149, 0.0
  %v159 = vsel %vm155, %v148, 0.0
  %v160 = vsel %vm156, %v147, 0.0
  %v161 = vsel %vm157, %v146, 0.0
  %162 = vst [vmem:[#allocation2 + $0x60] sm:$0xff] %v158
  %163 = vst [vmem:[#allocation2 + $0x68] sm:$0xff] %v159
  %164 = vst [vmem:[#allocation2 + $0x70] sm:$0xff] %v160
  %165 = vst [vmem:[#allocation2 + $0x78] sm:$0xff] %v161
  %166 = vst [vmem:[#allocation2 + $0x80] sm:$0xff] %v11
  %167 = vst [vmem:[#allocation2 + $0x88] sm:$0xff] %v12
  %168 = vst [vmem:[#allocation2 + $0x90] sm:$0xff] %v13
  %169 = vst [vmem:[#allocation2 + $0x98] sm:$0xff] %v14
  %170 = vrot.lane.b32.xlu0 %v11, 126
  %v171 = vpop.permute.xlu0 %170
  %172 = vrot.lane.b32.xlu0 %v12, 126
  %v173 = vpop.permute.xlu0 %172
  %174 = vrot.lane.b32.xlu0 %v13, 126
  %v175 = vpop.permute.xlu0 %174
  %176 = vrot.lane.b32.xlu0 %v14, 126
  %v177 = vpop.permute.xlu0 %176
  %vm178 = vcmp.lt.s32.totalorder %v18, 126
  %v179 = vsel %vm178, %v175, %v177
  %v180 = vsel %vm178, %v173, %v175
  %v181 = vsel %vm178, %v171, %v173
  %v182 = vsel %vm178, %v177, %v171
  %v183 = vsel %vm113, 1, 0
  %v184 = vsel %vm114, 1, 0
  %v185 = vsel %vm115, 1, 0
  %v186 = vsel %vm116, 1, 0
  %vm187 = vcmp.eq.s32.totalorder %v183, 1
  %vm188 = vcmp.eq.s32.totalorder %v184, 1
  %vm189 = vcmp.eq.s32.totalorder %v185, 1
  %vm190 = vcmp.eq.s32.totalorder %v186, 1
  %v191 = vsel %vm187, %v181, 0.0
  %v192 = vsel %vm188, %v180, 0.0
  %v193 = vsel %vm189, %v179, 0.0
  %v194 = vsel %vm190, %v182, 0.0
  %195 = vst [vmem:[#allocation2 + $0xa0] sm:$0xff] %v191
  %196 = vst [vmem:[#allocation2 + $0xa8] sm:$0xff] %v192
  %197 = vst [vmem:[#allocation2 + $0xb0] sm:$0xff] %v193
  %198 = vst [vmem:[#allocation2 + $0xb8] sm:$0xff] %v194
  %199 = vrot.lane.b32.xlu0 %v11, 98
  %v200 = vpop.permute.xlu0 %199
  %201 = vrot.lane.b32.xlu0 %v12, 98
  %v202 = vpop.permute.xlu0 %201
  %203 = vrot.lane.b32.xlu0 %v13, 98
  %v204 = vpop.permute.xlu0 %203
  %205 = vrot.lane.b32.xlu0 %v14, 98
  %v206 = vpop.permute.xlu0 %205
  %vm207 = vcmp.lt.s32.totalorder %v18, 98
  %v208 = vsel %vm207, %v204, %v206
  %v209 = vsel %vm207, %v202, %v204
  %v210 = vsel %vm207, %v200, %v202
  %v211 = vsel %vm207, %v206, %v200
  %vm212 = vcmp.lt.s32.totalorder %v22, 224
  %vm213 = vcmp.lt.s32.totalorder %v23, 224
  %vm214 = vcmp.lt.s32.totalorder %v24, 224
  %vm215 = vcmp.lt.s32.totalorder %v25, 224
  %vm216 = vmand %vm212, %vm47
  %vm217 = vmand %vm213, %vm48
  %vm218 = vmand %vm214, %vm49
  %vm219 = vmand %vm215, %vm50
  %v220 = vsel %vm216, 1, 0
  %v221 = vsel %vm217, 1, 0
  %v222 = vsel %vm218, 1, 0
  %v223 = vsel %vm219, 1, 0
  %vm224 = vcmp.eq.s32.totalorder %v220, 1
  %vm225 = vcmp.eq.s32.totalorder %v221, 1
  %vm226 = vcmp.eq.s32.totalorder %v222, 1
  %vm227 = vcmp.eq.s32.totalorder %v223, 1
  %v228 = vsel %vm224, %v210, 0.0
  %v229 = vsel %vm225, %v209, 0.0
  %v230 = vsel %vm226, %v208, 0.0
  %v231 = vsel %vm227, %v211, 0.0
  %232 = vst [vmem:[#allocation2 + $0xc0] sm:$0xff] %v228
  %233 = vst [vmem:[#allocation2 + $0xc8] sm:$0xff] %v229
  %234 = vst [vmem:[#allocation2 + $0xd0] sm:$0xff] %v230
  %235 = vst [vmem:[#allocation2 + $0xd8] sm:$0xff] %v231
  %236 = vrot.lane.b32.xlu0 %v11, 96
  %v237 = vpop.permute.xlu0 %236
  %238 = vrot.lane.b32.xlu0 %v12, 96
  %v239 = vpop.permute.xlu0 %238
  %240 = vrot.lane.b32.xlu0 %v13, 96
  %v241 = vpop.permute.xlu0 %240
  %242 = vrot.lane.b32.xlu0 %v14, 96
  %v243 = vpop.permute.xlu0 %242
  %vm244 = vcmp.lt.s32.totalorder %v18, 96
  %v245 = vsel %vm244, %v241, %v243
  %v246 = vsel %vm244, %v239, %v241
  %v247 = vsel %vm244, %v237, %v239
  %v248 = vsel %vm244, %v243, %v237
  %v249 = vsel %vm212, 1, 0
  %v250 = vsel %vm213, 1, 0
  %v251 = vsel %vm214, 1, 0
  %v252 = vsel %vm215, 1, 0
  %vm253 = vcmp.eq.s32.totalorder %v249, 1
  %vm254 = vcmp.eq.s32.totalorder %v250, 1
  %vm255 = vcmp.eq.s32.totalorder %v251, 1
  %vm256 = vcmp.eq.s32.totalorder %v252, 1
  %v257 = vsel %vm253, %v247, 0.0
  %v258 = vsel %vm254, %v246, 0.0
  %v259 = vsel %vm255, %v245, 0.0
  %v260 = vsel %vm256, %v248, 0.0
  %261 = vst [vmem:[#allocation2 + $0xe0] sm:$0xff] %v257
  %262 = vst [vmem:[#allocation2 + $0xe8] sm:$0xff] %v258
  %263 = vst [vmem:[#allocation2 + $0xf0] sm:$0xff] %v259
  %264 = vst [vmem:[#allocation2 + $0xf8] sm:$0xff] %v260
  %265 = vrot.lane.b32.xlu0 %v11, 94
  %v266 = vpop.permute.xlu0 %265
  %267 = vrot.lane.b32.xlu0 %v12, 94
  %v268 = vpop.permute.xlu0 %267
  %269 = vrot.lane.b32.xlu0 %v13, 94
  %v270 = vpop.permute.xlu0 %269
  %271 = vrot.lane.b32.xlu0 %v14, 94
  %v272 = vpop.permute.xlu0 %271
  %vm273 = vcmp.lt.s32.totalorder %v18, 94
  %v274 = vsel %vm273, %v270, %v272
  %v275 = vsel %vm273, %v268, %v270
  %v276 = vsel %vm273, %v266, %v268
  %v277 = vsel %vm273, %v272, %v266
  %vm278 = vmand %vm212, %vm113
  %vm279 = vmand %vm213, %vm114
  %vm280 = vmand %vm214, %vm115
  %vm281 = vmand %vm215, %vm116
  %v282 = vsel %vm278, 1, 0
  %v283 = vsel %vm279, 1, 0
  %v284 = vsel %vm280, 1, 0
  %v285 = vsel %vm281, 1, 0
  %vm286 = vcmp.eq.s32.totalorder %v282, 1
  %vm287 = vcmp.eq.s32.totalorder %v283, 1
  %vm288 = vcmp.eq.s32.totalorder %v284, 1
  %vm289 = vcmp.eq.s32.totalorder %v285, 1
  %v290 = vsel %vm286, %v276, 0.0
  %v291 = vsel %vm287, %v275, 0.0
  %v292 = vsel %vm288, %v274, 0.0
  %v293 = vsel %vm289, %v277, 0.0
  %294 = vst [vmem:[#allocation2 + $0x100] sm:$0xff] %v290
  %295 = vst [vmem:[#allocation2 + $0x108] sm:$0xff] %v291
  %296 = vst [vmem:[#allocation2 + $0x110] sm:$0xff] %v292
  %297 = vst [vmem:[#allocation2 + $0x118] sm:$0xff] %v293
  %v298 = vld [vmem:[#allocation2] sm:$0xff]
  %v299 = vld [vmem:[#allocation2 + $0x8] sm:$0xff]
  %v300 = vld [vmem:[#allocation2 + $0x10] sm:$0xff]
  %v301 = vld [vmem:[#allocation2 + $0x18] sm:$0xff]
  %v302 = vld [vmem:[#allocation2 + $0x20] sm:$0xff]
  %v303 = vld [vmem:[#allocation2 + $0x28] sm:$0xff]
  %v304 = vld [vmem:[#allocation2 + $0x30] sm:$0xff]
  %v305 = vld [vmem:[#allocation2 + $0x38] sm:$0xff]
  %v306 = vld [vmem:[#allocation2 + $0x40] sm:$0xff]
  %v307 = vld [vmem:[#allocation2 + $0x48] sm:$0xff]
  %v308 = vld [vmem:[#allocation2 + $0x50] sm:$0xff]
  %v309 = vld [vmem:[#allocation2 + $0x58] sm:$0xff]
  %v310 = vld [vmem:[#allocation2 + $0x60] sm:$0xff]
  %v311 = vld [vmem:[#allocation2 + $0x68] sm:$0xff]
  %v312 = vld [vmem:[#allocation2 + $0x70] sm:$0xff]
  %v313 = vld [vmem:[#allocation2 + $0x78] sm:$0xff]
  %v314 = vld [vmem:[#allocation2 + $0x80] sm:$0xff]
  %v315 = vld [vmem:[#allocation2 + $0x88] sm:$0xff]
  %v316 = vld [vmem:[#allocation2 + $0x90] sm:$0xff]
  %v317 = vld [vmem:[#allocation2 + $0x98] sm:$0xff]
  %v318 = vld [vmem:[#allocation2 + $0xa0] sm:$0xff]
  %v319 = vld [vmem:[#allocation2 + $0xa8] sm:$0xff]
  %v320 = vld [vmem:[#allocation2 + $0xb0] sm:$0xff]
  %v321 = vld [vmem:[#allocation2 + $0xb8] sm:$0xff]
  %v322 = vld [vmem:[#allocation2 + $0xc0] sm:$0xff]
  %v323 = vld [vmem:[#allocation2 + $0xc8] sm:$0xff]
  %v324 = vld [vmem:[#allocation2 + $0xd0] sm:$0xff]
  %v325 = vld [vmem:[#allocation2 + $0xd8] sm:$0xff]
  %v326 = vld [vmem:[#allocation2 + $0xe0] sm:$0xff]
  %v327 = vld [vmem:[#allocation2 + $0xe8] sm:$0xff]
  %v328 = vld [vmem:[#allocation2 + $0xf0] sm:$0xff]
  %v329 = vld [vmem:[#allocation2 + $0xf8] sm:$0xff]
  %v330 = vld [vmem:[#allocation2 + $0x100] sm:$0xff]
  %v331 = vld [vmem:[#allocation2 + $0x108] sm:$0xff]
  %v332 = vld [vmem:[#allocation2 + $0x110] sm:$0xff]
  %v333 = vld [vmem:[#allocation2 + $0x118] sm:$0xff]
  %vm334 = vcmask 588800
  %v336 = vsel %vm334, %v15, 0
  %v339 = vsel %vm334, %v16, 0
  %341 = vmatprep.subr.mxu0 %v299
  %342 = vmatpush1.msra.mxu0 %v298
  %343 = vmatprep.subr.mxu0 %v303
  %344 = vmatpush1.msra.mxu0 %v302
  %345 = vmatprep.subr.mxu0 %v307
  %346 = vmatpush1.msra.mxu0 %v306
  %347 = vmatprep.subr.mxu0 %v311
  %348 = vmatpush1.msra.mxu0 %v310
  %349 = vmatprep.subr.mxu0 %v315
  %350 = vmatpush1.msra.mxu0 %v314
  %351 = vmatprep.subr.mxu0 %v319
  %352 = vmatpush1.msra.mxu0 %v318
  %353 = vmatprep.subr.mxu0 %v323
  %354 = vmatpush1.msra.mxu0 %v322
  %355 = vmatprep.subr.mxu0 %v327
  %356 = vmatpush1.msra.mxu0 %v326
  %357 = vmatprep.subr.mxu0 %v331
  %358 = vmatpush1.msra.mxu0 %v330
  %359 = vmatprep.subr.mxu0 0.0
  %360 = vmatpush1.msra.mxu0 0.0
  %361 = vmatprep.subr.mxu0 0.0
  %362 = vmatpush1.msra.mxu0 0.0
  %363 = vmatprep.subr.mxu0 0.0
  %364 = vmatpush1.msra.mxu0 0.0
  %365 = vmatprep.subr.mxu0 0.0
  %366 = vmatpush1.msra.mxu0 0.0
  %367 = vmatprep.subr.mxu0 0.0
  %368 = vmatpush1.msra.mxu0 0.0
  %369 = vmatprep.subr.mxu0 0.0
  %370 = vmatpush1.msra.mxu0 0.0
  %371 = vmatprep.subr.mxu0 0.0
  %372 = vmatpush1.msra.mxu0 0.0
  %373 = vmatprep.subr.mxu0 0.0
  %374 = vmatpush1.msra.mxu0 0.0
  %375 = vmatprep.subr.mxu0 0.0
  %376 = vmatpush1.msra.mxu0 0.0
  %377 = vmatprep.subr.mxu0 0.0
  %378 = vmatpush1.msra.mxu0 0.0
  %379 = vmatprep.subr.mxu0 0.0
  %380 = vmatpush1.msra.mxu0 0.0
  %381 = vmatprep.subr.mxu0 0.0
  %382 = vmatpush1.msra.mxu0 0.0
  %383 = vmatprep.subr.mxu0 0.0
  %384 = vmatpush1.msra.mxu0 0.0
  %385 = vmatprep.subr.mxu0 0.0
  %386 = vmatpush1.msra.mxu0 0.0
  %387 = vmatprep.subr.mxu0 0.0
  %388 = vmatpush1.msra.mxu0 0.0
  %389 = vmatprep.subr.mxu0 0.0
  %390 = vmatpush1.msra.mxu0 0.0
  %391 = vmatprep.subr.mxu0 0.0
  %392 = vmatpush1.msra.mxu0 0.0
  %393 = vmatprep.subr.mxu0 0.0
  %394 = vmatpush1.msra.mxu0 0.0
  %395 = vmatprep.subr.mxu0 0.0
  %396 = vmatpush1.msra.mxu0 0.0
  %397 = vmatprep.subr.mxu0 0.0
  %398 = vmatpush1.msra.mxu0 0.0
  %399 = vmatprep.subr.mxu0 0.0
  %400 = vmatpush1.msra.mxu0 0.0
  %401 = vmatprep.subr.mxu0 0.0
  %402 = vmatpush1.msra.mxu0 0.0
  %403 = vmatprep.subr.mxu0 0.0
  %404 = vmatpush1.msra.mxu0 0.0
  %405 = vmatprep.mubr.f32.mxu0 0.0
  %406 = vmatmul.mubr.f32.gmra.mrb[0].mxu0 %v336
  %v407 = vpop.f32.mrb[0].mxu0
  %v408 = vadd.f32 0.0, %v407
  %v409 = vpop.f32.mrb[0].mxu0
  %v410 = vadd.f32 0.0, %v409
  %411 = vmatprep.mubr.f32.mxu0 0.0
  %412 = vmatmul.mubr.f32.gmra.mrb[0].mxu0 %v339
  %v413 = vpop.f32.mrb[0].mxu0
  %v414 = vadd.f32 0.0, %v413
  %v415 = vpop.f32.mrb[0].mxu0
  %v416 = vadd.f32 0.0, %v415
  %417 = vdwg.mxu0
  %418 = vmatprep.subr.mxu0 %v301
  %419 = vmatpush1.msra.mxu0 %v300
  %420 = vmatprep.subr.mxu0 %v305
  %421 = vmatpush1.msra.mxu0 %v304
  %422 = vmatprep.subr.mxu0 %v309
  %423 = vmatpush1.msra.mxu0 %v308
  %424 = vmatprep.subr.mxu0 %v313
  %425 = vmatpush1.msra.mxu0 %v312
  %426 = vmatprep.subr.mxu0 %v317
  %427 = vmatpush1.msra.mxu0 %v316
  %428 = vmatprep.subr.mxu0 %v321
  %429 = vmatpush1.msra.mxu0 %v320
  %430 = vmatprep.subr.mxu0 %v325
  %431 = vmatpush1.msra.mxu0 %v324
  %432 = vmatprep.subr.mxu0 %v329
  %433 = vmatpush1.msra.mxu0 %v328
  %434 = vmatprep.subr.mxu0 %v333
  %435 = vmatpush1.msra.mxu0 %v332
  %436 = vmatprep.subr.mxu0 0.0
  %437 = vmatpush1.msra.mxu0 0.0
  %438 = vmatprep.subr.mxu0 0.0
  %439 = vmatpush1.msra.mxu0 0.0
  %440 = vmatprep.subr.mxu0 0.0
  %441 = vmatpush1.msra.mxu0 0.0
  %442 = vmatprep.subr.mxu0 0.0
  %443 = vmatpush1.msra.mxu0 0.0
  %444 = vmatprep.subr.mxu0 0.0
  %445 = vmatpush1.msra.mxu0 0.0
  %446 = vmatprep.subr.mxu0 0.0
  %447 = vmatpush1.msra.mxu0 0.0
  %448 = vmatprep.subr.mxu0 0.0
  %449 = vmatpush1.msra.mxu0 0.0
  %450 = vmatprep.subr.mxu0 0.0
  %451 = vmatpush1.msra.mxu0 0.0
  %452 = vmatprep.subr.mxu0 0.0
  %453 = vmatpush1.msra.mxu0 0.0
  %454 = vmatprep.subr.mxu0 0.0
  %455 = vmatpush1.msra.mxu0 0.0
  %456 = vmatprep.subr.mxu0 0.0
  %457 = vmatpush1.msra.mxu0 0.0
  %458 = vmatprep.subr.mxu0 0.0
  %459 = vmatpush1.msra.mxu0 0.0
  %460 = vmatprep.subr.mxu0 0.0
  %461 = vmatpush1.msra.mxu0 0.0
  %462 = vmatprep.subr.mxu0 0.0
  %463 = vmatpush1.msra.mxu0 0.0
  %464 = vmatprep.subr.mxu0 0.0
  %465 = vmatpush1.msra.mxu0 0.0
  %466 = vmatprep.subr.mxu0 0.0
  %467 = vmatpush1.msra.mxu0 0.0
  %468 = vmatprep.subr.mxu0 0.0
  %469 = vmatpush1.msra.mxu0 0.0
  %470 = vmatprep.subr.mxu0 0.0
  %471 = vmatpush1.msra.mxu0 0.0
  %472 = vmatprep.subr.mxu0 0.0
  %473 = vmatpush1.msra.mxu0 0.0
  %474 = vmatprep.subr.mxu0 0.0
  %475 = vmatpush1.msra.mxu0 0.0
  %476 = vmatprep.subr.mxu0 0.0
  %477 = vmatpush1.msra.mxu0 0.0
  %478 = vmatprep.subr.mxu0 0.0
  %479 = vmatpush1.msra.mxu0 0.0
  %480 = vmatprep.subr.mxu0 0.0
  %481 = vmatpush1.msra.mxu0 0.0
  %482 = vmatprep.mubr.f32.mxu0 0.0
  %483 = vmatmul.mubr.f32.gmra.mrb[0].mxu0 %v336
  %v484 = vpop.f32.mrb[0].mxu0
  %v485 = vadd.f32 0.0, %v484
  %v486 = vpop.f32.mrb[0].mxu0
  %v487 = vadd.f32 0.0, %v486
  %488 = vmatprep.mubr.f32.mxu0 0.0
  %489 = vmatmul.mubr.f32.gmra.mrb[0].mxu0 %v339
  %v490 = vpop.f32.mrb[0].mxu0
  %v491 = vadd.f32 0.0, %v490
  %v492 = vpop.f32.mrb[0].mxu0
  %v493 = vadd.f32 0.0, %v492
  %494 = vdwg.mxu0
  %v495 = vadd.f32 %v408, %v410
  %v496 = vadd.f32 %v495, %v485
  %v497 = vadd.f32 %v496, %v487
  %498 = vadd.xlane.f32.xlu0 %v497
  %v499 = vpop.xlane.xlu0 %498
  %v500 = vadd.f32 %v414, %v416
  %v501 = vadd.f32 %v500, %v491
  %v502 = vadd.f32 %v501, %v493
  %503 = vadd.xlane.f32.xlu0 %v502
  %v504 = vpop.xlane.xlu0 %503
  %v505 = vmul.f32 %v499, 0.001953125
  %v506 = vmul.f32 %v504, 0.001953125
  %v507 = vmul.f32 %v408, %v408
  %v508 = vmul.f32 %v410, %v410
  %v509 = vmul.f32 %v485, %v485
  %v510 = vmul.f32 %v487, %v487
  %v511 = vmul.f32 %v414, %v414
  %v512 = vmul.f32 %v416, %v416
  %v513 = vmul.f32 %v491, %v491
  %v514 = vmul.f32 %v493, %v493
  %v515 = vadd.f32 %v507, %v508
  %v516 = vadd.f32 %v515, %v509
  %v517 = vadd.f32 %v516, %v510
  %518 = vadd.xlane.f32.xlu0 %v517
  %v519 = vpop.xlane.xlu0 %518
  %v520 = vadd.f32 %v511, %v512
  %v521 = vadd.f32 %v520, %v513
  %v522 = vadd.f32 %v521, %v514
  %523 = vadd.xlane.f32.xlu0 %v522
  %v524 = vpop.xlane.xlu0 %523
  %v525 = vmul.f32 %v519, 0.001953125
  %v526 = vmul.f32 %v524, 0.001953125
  %v527 = vmul.f32 %v505, %v505
  %v528 = vmul.f32 %v506, %v506
  %v529 = vsub.f32 %v525, %v527
  %v530 = vsub.f32 %v526, %v528
  %v531 = vadd.f32 %v529, 1e-05
  %v532 = vadd.f32 %v530, 1e-05
  %v533 = vrsqrt.pop %v531
  %v534 = vrsqrt.pop %v532
  %v535 = vsub.f32 %v408, %v505
  %v536 = vsub.f32 %v410, %v505
  %v537 = vsub.f32 %v485, %v505
  %v538 = vsub.f32 %v487, %v505
  %v539 = vsub.f32 %v414, %v506
  %v540 = vsub.f32 %v416, %v506
  %v541 = vsub.f32 %v491, %v506
  %v542 = vsub.f32 %v493, %v506
  %v543 = vmul.f32 %v535, %v533
  %v544 = vmul.f32 %v536, %v533
  %v545 = vmul.f32 %v537, %v533
  %v546 = vmul.f32 %v538, %v533
  %v547 = vmul.f32 %v539, %v534
  %v548 = vmul.f32 %v540, %v534
  %v549 = vmul.f32 %v541, %v534
  %v550 = vmul.f32 %v542, %v534
  %v551 = vmax.f32 %v543, 0.0
  %v552 = vmax.f32 %v544, 0.0
  %v553 = vmax.f32 %v545, 0.0
  %v554 = vmax.f32 %v546, 0.0
  %v555 = vmax.f32 %v547, 0.0
  %v556 = vmax.f32 %v548, 0.0
  %v557 = vmax.f32 %v549, 0.0
  %v558 = vmax.f32 %v550, 0.0
  %559 = vst [vmem:[%s2] sm:$0xff] %v551
  %560 = vst [vmem:[%s2 + $0x8] sm:$0xff] %v552
  %561 = vst [vmem:[%s2 + $0x10] sm:$0xff] %v555
  %562 = vst [vmem:[%s2 + $0x18] sm:$0xff] %v556
  %s563 = scalar_lea.vmem %s2, 32
  %564 = vst [vmem:[%s563] sm:$0xff] %v553
  %565 = vst [vmem:[%s563 + $0x8] sm:$0xff] %v554
  %566 = vst [vmem:[%s563 + $0x10] sm:$0xff] %v557
  %567 = vst [vmem:[%s563 + $0x18] sm:$0xff] %v558
  // Predicated region
  $region10: #{aspp_forward.1} parent=0 // pred_check
    _
  $region11: #{aspp_forward.1} parent=0 // pred_check_branch
    %569 = sbr.rel (0) target = $region13
  $region12: #{aspp_forward.1} parent=0 // pred_region
    _
  $region13: #{aspp_forward.1} parent=0 // pred_fallthru
    _
  // Predicated region
  $region14: #{aspp_forward.1} parent=0 // pred_check
    _
  $region15: #{aspp_forward.1} parent=0 // pred_check_branch
    %571 = sbr.rel (0) target = $region17
  $region16: #{aspp_forward.1} parent=0 // pred_region
    _
  $region17: #{aspp_forward.1} parent=0 // pred_fallthru
    _

</llo_original>
